<compile_context>
chip_gen: v7x
topology: tpu7x:2x2x1
jax: 0.10.0
libtpu: 0.0.40
codegen_flags: <defaults>
</compile_context>

<pallas_src>
import jax
import jax.numpy as jnp
from jax import lax
from jax.experimental import pallas as pl
from jax.experimental.pallas import tpu as pltpu

BN_EPS = 1e-5
LRELU_SLOPE = 0.2

# Conservative single-shot budget (v5e scoped-VMEM default is 16 MiB).
_SINGLE_SHOT_VMEM_BUDGET = 8 * 1024 * 1024


# ---------------------------------------------------------------------------
# Pallas kernels
# ---------------------------------------------------------------------------
def _bn_lrelu(conv, g, b):
    """Fused BatchNorm2d (training-mode batch stats over M) + LeakyReLU, f32."""
    m_inv = 1.0 / conv.shape[0]
    mean = jnp.sum(conv, axis=0, keepdims=True) * m_inv
    ex2 = jnp.sum(conv * conv, axis=0, keepdims=True) * m_inv
    var = ex2 - mean * mean                     # one-pass stats
    scale = lax.rsqrt(var + BN_EPS) * g
    y = (conv - mean) * scale + b
    return jnp.where(y > 0, y, LRELU_SLOPE * y)


def _conv_bn_lrelu_kernel(p_ref, w_ref, g_ref, b_ref, o_ref):
    """Single-shot (grid-less) bf16 matmul + fused BN + LeakyReLU.

    p_ref : (M, K)  bf16 im2col patches (fully VMEM resident)
    w_ref : (K, C)  bf16 flattened conv weight
    g_ref : (1, C)  f32 BN gamma
    b_ref : (1, C)  f32 BN beta
    o_ref : (M, C)  f32 activated output
    """
    conv = jnp.dot(p_ref[...], w_ref[...], preferred_element_type=jnp.float32)
    o_ref[...] = _bn_lrelu(conv, g_ref[...], b_ref[...]).astype(o_ref.dtype)


def _conv_bn_lrelu_ktiled_kernel(p_ref, w_ref, g_ref, b_ref, o_ref):
    """K-tiled variant: accumulate directly into the resident f32 output block."""
    k = pl.program_id(0)

    @pl.when(k == 0)
    def _():
        o_ref[...] = jnp.zeros_like(o_ref)

    o_ref[...] += jnp.dot(
        p_ref[...], w_ref[...], preferred_element_type=jnp.float32
    )

    @pl.when(k == pl.num_programs(0) - 1)
    def _():
        o_ref[...] = _bn_lrelu(o_ref[...], g_ref[...], b_ref[...]).astype(
            o_ref.dtype
        )


def _final_conv_t_kernel(wt_ref, pt_ref, o_ref):
    """Final conv (no BN/activation), transposed: o^T = w^T @ patches^T.

    wt_ref : (1, K)  bf16
    pt_ref : (K, M)  bf16
    o_ref  : (1, M)  f32  (lane-dense: M on the lane axis)
    """
    o_ref[...] = jnp.dot(
        wt_ref[...], pt_ref[...], preferred_element_type=jnp.float32
    )


# ---------------------------------------------------------------------------
# Pallas wrappers
# ---------------------------------------------------------------------------
def conv_bn_lrelu_pallas(patches, w2d, gamma, beta):
    M, K = patches.shape
    C = w2d.shape[1]
    vmem_bytes = M * K * 2 + K * C * 2 + M * C * 4
    if vmem_bytes <= _SINGLE_SHOT_VMEM_BUDGET:
        # Single shot: no grid, no accumulator scratch, no init/copy passes.
        return pl.pallas_call(
            _conv_bn_lrelu_kernel,
            out_shape=jax.ShapeDtypeStruct((M, C), jnp.float32),
        )(patches, w2d, gamma, beta)

    # K-tiled fallback for large K (not exercised at this toy config).
    tk = K
    for cand in (2048, 1024, 512, 256, 128):
        if K % cand == 0:
            tk = cand
            break
    return pl.pallas_call(
        _conv_bn_lrelu_ktiled_kernel,
        out_shape=jax.ShapeDtypeStruct((M, C), jnp.float32),
        grid_spec=pltpu.PrefetchScalarGridSpec(
            num_scalar_prefetch=0,
            grid=(K // tk,),
            in_specs=[
                pl.BlockSpec((M, tk), lambda k: (0, k)),
                pl.BlockSpec((tk, C), lambda k: (k, 0)),
                pl.BlockSpec((1, C), lambda k: (0, 0)),
                pl.BlockSpec((1, C), lambda k: (0, 0)),
            ],
            out_specs=pl.BlockSpec((M, C), lambda k: (0, 0)),
        ),
        compiler_params=pltpu.CompilerParams(
            dimension_semantics=("arbitrary",)
        ),
    )(patches, w2d, gamma, beta)


def conv_final_pallas(w2d, patches):
    """Final conv with C_out == 1: compute transposed so M is lane-dense."""
    M, K = patches.shape
    C = w2d.shape[1]
    out_t = pl.pallas_call(
        _final_conv_t_kernel,
        out_shape=jax.ShapeDtypeStruct((C, M), jnp.float32),
    )(w2d.T, patches.T)
    return out_t.T  # (M, C)


# ---------------------------------------------------------------------------
# Glue: im2col patch extraction (plain JAX), parameter setup, forward pass
# ---------------------------------------------------------------------------
def im2col(x_nhwc, ksize, stride, pad):
    """x: (N,H,W,C) -> bf16 patches (N*Ho*Wo, k*k*C); K-order = (kh, kw, c)."""
    N, H, W, C = x_nhwc.shape
    Ho = (H + 2 * pad - ksize) // stride + 1
    Wo = (W + 2 * pad - ksize) // stride + 1
    xp = jnp.pad(
        x_nhwc.astype(jnp.bfloat16), ((0, 0), (pad, pad), (pad, pad), (0, 0))
    )
    cols = []
    for kh in range(ksize):
        for kw in range(ksize):
            sl = xp[:,
                    kh:kh + (Ho - 1) * stride + 1:stride,
                    kw:kw + (Wo - 1) * stride + 1:stride,
                    :]
            cols.append(sl)
    patches = jnp.concatenate(cols, axis=-1)  # (N, Ho, Wo, k*k*C)
    return patches.reshape(N * Ho * Wo, ksize * ksize * C), Ho, Wo


def init_params(key, nc, ndf):
    """Conv weights in HWIO layout; BN gamma/beta as in PyTorch default init."""
    chans = [(nc, ndf), (ndf, ndf * 2), (ndf * 2, ndf * 4), (ndf * 4, 1)]
    params = {}
    for i, (cin, cout) in enumerate(chans):
        key, sub = jax.random.split(key)
        params[f"w{i}"] = (
            0.02 * jax.random.normal(sub, (4, 4, cin, cout), jnp.float32)
        )
        if i < 3:
            params[f"gamma{i}"] = jnp.ones((1, cout), jnp.float32)
            params[f"beta{i}"] = jnp.zeros((1, cout), jnp.float32)
    return params


@jax.jit
def discriminator_forward(x_nchw, params):
    x = jnp.transpose(x_nchw, (0, 2, 3, 1)).astype(jnp.float32)  # NCHW -> NHWC
    N = x.shape[0]

    # Layers 0..2: Conv(4,2,1) + BatchNorm + LeakyReLU(0.2) (fused Pallas kernel)
    for i in range(3):
        w = params[f"w{i}"]
        cout = w.shape[-1]
        patches, Ho, Wo = im2col(x, 4, 2, 1)
        y = conv_bn_lrelu_pallas(
            patches,
            w.reshape(-1, cout).astype(jnp.bfloat16),
            params[f"gamma{i}"],
            params[f"beta{i}"],
        )
        x = y.reshape(N, Ho, Wo, cout)

    # Layer 3: Conv(4,1,1), no BN, no activation (lane-dense transposed matmul)
    w = params["w3"]
    patches, Ho, Wo = im2col(x, 4, 1, 1)
    y = conv_final_pallas(w.reshape(-1, 1).astype(jnp.bfloat16), patches)
    x = y.reshape(N, Ho, Wo, 1)

    return jnp.transpose(x, (0, 3, 1, 2))  # NHWC -> NCHW


# Pure-JAX reference (correctness check; mirrors the bf16 operand casts so the
# comparison is apples-to-apples with the bf16 MXU inputs).
def discriminator_reference(x_nchw, params):
    x = jnp.transpose(x_nchw, (0, 2, 3, 1)).astype(jnp.float32)
    dn = ("NHWC", "HWIO", "NHWC")
    for i in range(3):
        w = params[f"w{i}"].astype(jnp.bfloat16)
        x = lax.conv_general_dilated(
            x.astype(jnp.bfloat16), w, (2, 2), ((1, 1), (1, 1)),
            dimension_numbers=dn, preferred_element_type=jnp.float32,
        )
        mean = jnp.mean(x, axis=(0, 1, 2), keepdims=True)
        var = jnp.mean(jnp.square(x - mean), axis=(0, 1, 2), keepdims=True)
        g = params[f"gamma{i}"].reshape(1, 1, 1, -1)
        b = params[f"beta{i}"].reshape(1, 1, 1, -1)
        x = (x - mean) * lax.rsqrt(var + BN_EPS) * g + b
        x = jnp.where(x > 0, x, LRELU_SLOPE * x)
    x = lax.conv_general_dilated(
        x.astype(jnp.bfloat16), params["w3"].astype(jnp.bfloat16),
        (1, 1), ((1, 1), (1, 1)),
        dimension_numbers=dn, preferred_element_type=jnp.float32,
    )
    return jnp.transpose(x, (0, 3, 1, 2))


if __name__ == "__main__":
    # Small config consistent with the module's constructor: nc=8, ndf=8,
    # input (N=2, C=8, H=16, W=16) in NCHW.  Output: (2, 1, 1, 1).
    NC, NDF = 8, 8
    key = jax.random.PRNGKey(0)
    key, kx = jax.random.split(key)
    x = jax.random.normal(kx, (2, NC, 16, 16), jnp.float32)
    params = init_params(key, NC, NDF)

    out = discriminator_forward(x, params)
    out = jax.block_until_ready(out)

    ref = jax.block_until_ready(discriminator_reference(x, params))
    assert out.shape == (2, 1, 1, 1), out.shape
    # bf16 MXU operands + one-pass BN stats => small numeric differences vs the
    # XLA conv reference; 1e-2 is tight enough to catch any structural bug.
    assert jnp.allclose(out, ref, atol=1e-2, rtol=1e-2), (
        float(jnp.max(jnp.abs(out - ref)))
    )
    print("KERNEL_OK")
</pallas_src>

<mosaic_0001>
module attributes {stable_mosaic.version = 11 : i64} {
  func.func @_conv_bn_lrelu_kernel(%arg0: memref<128x128xbf16, #tpu.memory_space<vmem>>, %arg1: memref<128x8xbf16, #tpu.memory_space<vmem>>, %arg2: memref<1x8xf32, #tpu.memory_space<vmem>>, %arg3: memref<1x8xf32, #tpu.memory_space<vmem>>, %arg4: memref<128x8xf32, #tpu.memory_space<vmem>>) attributes {dimension_semantics = [], scalar_prefetch = 0 : i64, scratch_operands = 0 : i64, tpu.core_type = #tpu.core_type<tc>} {
    %c0 = arith.constant 0 : index
    %c0_0 = arith.constant 0 : index
    %0 = vector.load %arg0[%c0, %c0_0] : memref<128x128xbf16, #tpu.memory_space<vmem>>, vector<128x128xbf16>
    %c0_1 = arith.constant 0 : index
    %c0_2 = arith.constant 0 : index
    %1 = vector.load %arg1[%c0_1, %c0_2] : memref<128x8xbf16, #tpu.memory_space<vmem>>, vector<128x8xbf16>
    %cst = arith.constant dense<0.000000e+00> : vector<128x8xf32>
    %2 = tpu.matmul %0, %1, %cst {dimension_numbers = #tpu.dot_dimension_numbers<[1], [0], [0], [1], [0, 0, 1, 1], [], []>} : vector<128x128xbf16>, vector<128x8xbf16>, vector<128x8xf32> -> vector<128x8xf32>
    %c0_3 = arith.constant 0 : index
    %c0_4 = arith.constant 0 : index
    %3 = vector.load %arg2[%c0_3, %c0_4] : memref<1x8xf32, #tpu.memory_space<vmem>>, vector<1x8xf32>
    %c0_5 = arith.constant 0 : index
    %c0_6 = arith.constant 0 : index
    %4 = vector.load %arg3[%c0_5, %c0_6] : memref<1x8xf32, #tpu.memory_space<vmem>>, vector<1x8xf32>
    %cst_7 = arith.constant dense<0.000000e+00> : vector<8xf32>
    %5 = vector.multi_reduction <add>, %2, %cst_7 [0] : vector<128x8xf32> to vector<8xf32>
    %6 = vector.shape_cast %5 : vector<8xf32> to vector<1x8xf32>
    %cst_8 = arith.constant 7.812500e-03 : f32
    %7 = vector.broadcast %cst_8 : f32 to vector<1x8xf32>
    %8 = arith.mulf %6, %7 : vector<1x8xf32>
    %9 = arith.mulf %2, %2 : vector<128x8xf32>
    %cst_9 = arith.constant dense<0.000000e+00> : vector<8xf32>
    %10 = vector.multi_reduction <add>, %9, %cst_9 [0] : vector<128x8xf32> to vector<8xf32>
    %11 = vector.shape_cast %10 : vector<8xf32> to vector<1x8xf32>
    %cst_10 = arith.constant 7.812500e-03 : f32
    %12 = vector.broadcast %cst_10 : f32 to vector<1x8xf32>
    %13 = arith.mulf %11, %12 : vector<1x8xf32>
    %14 = arith.mulf %8, %8 : vector<1x8xf32>
    %15 = arith.subf %13, %14 : vector<1x8xf32>
    %cst_11 = arith.constant 9.99999974E-6 : f32
    %16 = vector.broadcast %cst_11 : f32 to vector<1x8xf32>
    %17 = arith.addf %15, %16 : vector<1x8xf32>
    %18 = math.rsqrt %17 : vector<1x8xf32>
    %19 = arith.mulf %18, %3 : vector<1x8xf32>
    %20 = vector.broadcast %8 : vector<1x8xf32> to vector<128x8xf32>
    %21 = arith.subf %2, %20 : vector<128x8xf32>
    %22 = vector.broadcast %19 : vector<1x8xf32> to vector<128x8xf32>
    %23 = arith.mulf %21, %22 : vector<128x8xf32>
    %24 = vector.broadcast %4 : vector<1x8xf32> to vector<128x8xf32>
    %25 = arith.addf %23, %24 : vector<128x8xf32>
    %cst_12 = arith.constant 0.000000e+00 : f32
    %26 = vector.broadcast %cst_12 : f32 to vector<128x8xf32>
    %27 = arith.cmpf ogt, %25, %26 : vector<128x8xf32>
    %cst_13 = arith.constant 2.000000e-01 : f32
    %28 = vector.broadcast %cst_13 : f32 to vector<128x8xf32>
    %29 = arith.mulf %28, %25 : vector<128x8xf32>
    %30 = arith.select %27, %25, %29 : vector<128x8xi1>, vector<128x8xf32>
    %c0_14 = arith.constant 0 : index
    %c0_15 = arith.constant 0 : index
    %31 = vector.load %arg4[%c0_14, %c0_15] : memref<128x8xf32, #tpu.memory_space<vmem>>, vector<128x8xf32>
    tpu.vector_store %arg4[%c0_14, %c0_15], %30 {strides = array<i32>} : memref<128x8xf32, #tpu.memory_space<vmem>>, vector<128x8xf32>,
    return
  }
}

module attributes {stable_mosaic.version = 11 : i64} {
  func.func @_conv_bn_lrelu_kernel(%arg0: memref<32x128xbf16, #tpu.memory_space<vmem>>, %arg1: memref<128x16xbf16, #tpu.memory_space<vmem>>, %arg2: memref<1x16xf32, #tpu.memory_space<vmem>>, %arg3: memref<1x16xf32, #tpu.memory_space<vmem>>, %arg4: memref<32x16xf32, #tpu.memory_space<vmem>>) attributes {dimension_semantics = [], scalar_prefetch = 0 : i64, scratch_operands = 0 : i64, tpu.core_type = #tpu.core_type<tc>} {
    %c0 = arith.constant 0 : index
    %c0_0 = arith.constant 0 : index
    %0 = vector.load %arg0[%c0, %c0_0] : memref<32x128xbf16, #tpu.memory_space<vmem>>, vector<32x128xbf16>
    %c0_1 = arith.constant 0 : index
    %c0_2 = arith.constant 0 : index
    %1 = vector.load %arg1[%c0_1, %c0_2] : memref<128x16xbf16, #tpu.memory_space<vmem>>, vector<128x16xbf16>
    %cst = arith.constant dense<0.000000e+00> : vector<32x16xf32>
    %2 = tpu.matmul %0, %1, %cst {dimension_numbers = #tpu.dot_dimension_numbers<[1], [0], [0], [1], [0, 0, 1, 1], [], []>} : vector<32x128xbf16>, vector<128x16xbf16>, vector<32x16xf32> -> vector<32x16xf32>
    %c0_3 = arith.constant 0 : index
    %c0_4 = arith.constant 0 : index
    %3 = vector.load %arg2[%c0_3, %c0_4] : memref<1x16xf32, #tpu.memory_space<vmem>>, vector<1x16xf32>
    %c0_5 = arith.constant 0 : index
    %c0_6 = arith.constant 0 : index
    %4 = vector.load %arg3[%c0_5, %c0_6] : memref<1x16xf32, #tpu.memory_space<vmem>>, vector<1x16xf32>
    %cst_7 = arith.constant dense<0.000000e+00> : vector<16xf32>
    %5 = vector.multi_reduction <add>, %2, %cst_7 [0] : vector<32x16xf32> to vector<16xf32>
    %6 = vector.shape_cast %5 : vector<16xf32> to vector<1x16xf32>
    %cst_8 = arith.constant 3.125000e-02 : f32
    %7 = vector.broadcast %cst_8 : f32 to vector<1x16xf32>
    %8 = arith.mulf %6, %7 : vector<1x16xf32>
    %9 = arith.mulf %2, %2 : vector<32x16xf32>
    %cst_9 = arith.constant dense<0.000000e+00> : vector<16xf32>
    %10 = vector.multi_reduction <add>, %9, %cst_9 [0] : vector<32x16xf32> to vector<16xf32>
    %11 = vector.shape_cast %10 : vector<16xf32> to vector<1x16xf32>
    %cst_10 = arith.constant 3.125000e-02 : f32
    %12 = vector.broadcast %cst_10 : f32 to vector<1x16xf32>
    %13 = arith.mulf %11, %12 : vector<1x16xf32>
    %14 = arith.mulf %8, %8 : vector<1x16xf32>
    %15 = arith.subf %13, %14 : vector<1x16xf32>
    %cst_11 = arith.constant 9.99999974E-6 : f32
    %16 = vector.broadcast %cst_11 : f32 to vector<1x16xf32>
    %17 = arith.addf %15, %16 : vector<1x16xf32>
    %18 = math.rsqrt %17 : vector<1x16xf32>
    %19 = arith.mulf %18, %3 : vector<1x16xf32>
    %20 = vector.broadcast %8 : vector<1x16xf32> to vector<32x16xf32>
    %21 = arith.subf %2, %20 : vector<32x16xf32>
    %22 = vector.broadcast %19 : vector<1x16xf32> to vector<32x16xf32>
    %23 = arith.mulf %21, %22 : vector<32x16xf32>
    %24 = vector.broadcast %4 : vector<1x16xf32> to vector<32x16xf32>
    %25 = arith.addf %23, %24 : vector<32x16xf32>
    %cst_12 = arith.constant 0.000000e+00 : f32
    %26 = vector.broadcast %cst_12 : f32 to vector<32x16xf32>
    %27 = arith.cmpf ogt, %25, %26 : vector<32x16xf32>
    %cst_13 = arith.constant 2.000000e-01 : f32
    %28 = vector.broadcast %cst_13 : f32 to vector<32x16xf32>
    %29 = arith.mulf %28, %25 : vector<32x16xf32>
    %30 = arith.select %27, %25, %29 : vector<32x16xi1>, vector<32x16xf32>
    %c0_14 = arith.constant 0 : index
    %c0_15 = arith.constant 0 : index
    %31 = vector.load %arg4[%c0_14, %c0_15] : memref<32x16xf32, #tpu.memory_space<vmem>>, vector<32x16xf32>
    tpu.vector_store %arg4[%c0_14, %c0_15], %30 {strides = array<i32>} : memref<32x16xf32, #tpu.memory_space<vmem>>, vector<32x16xf32>,
    return
  }
}

module attributes {stable_mosaic.version = 11 : i64} {
  func.func @_conv_bn_lrelu_kernel(%arg0: memref<8x256xbf16, #tpu.memory_space<vmem>>, %arg1: memref<256x32xbf16, #tpu.memory_space<vmem>>, %arg2: memref<1x32xf32, #tpu.memory_space<vmem>>, %arg3: memref<1x32xf32, #tpu.memory_space<vmem>>, %arg4: memref<8x32xf32, #tpu.memory_space<vmem>>) attributes {dimension_semantics = [], scalar_prefetch = 0 : i64, scratch_operands = 0 : i64, tpu.core_type = #tpu.core_type<tc>} {
    %c0 = arith.constant 0 : index
    %c0_0 = arith.constant 0 : index
    %0 = vector.load %arg0[%c0, %c0_0] : memref<8x256xbf16, #tpu.memory_space<vmem>>, vector<8x256xbf16>
    %c0_1 = arith.constant 0 : index
    %c0_2 = arith.constant 0 : index
    %1 = vector.load %arg1[%c0_1, %c0_2] : memref<256x32xbf16, #tpu.memory_space<vmem>>, vector<256x32xbf16>
    %cst = arith.constant dense<0.000000e+00> : vector<8x32xf32>
    %2 = tpu.matmul %0, %1, %cst {dimension_numbers = #tpu.dot_dimension_numbers<[1], [0], [0], [1], [0, 0, 1, 1], [], []>} : vector<8x256xbf16>, vector<256x32xbf16>, vector<8x32xf32> -> vector<8x32xf32>
    %c0_3 = arith.constant 0 : index
    %c0_4 = arith.constant 0 : index
    %3 = vector.load %arg2[%c0_3, %c0_4] : memref<1x32xf32, #tpu.memory_space<vmem>>, vector<1x32xf32>
    %c0_5 = arith.constant 0 : index
    %c0_6 = arith.constant 0 : index
    %4 = vector.load %arg3[%c0_5, %c0_6] : memref<1x32xf32, #tpu.memory_space<vmem>>, vector<1x32xf32>
    %cst_7 = arith.constant dense<0.000000e+00> : vector<32xf32>
    %5 = vector.multi_reduction <add>, %2, %cst_7 [0] : vector<8x32xf32> to vector<32xf32>
    %6 = vector.shape_cast %5 : vector<32xf32> to vector<1x32xf32>
    %cst_8 = arith.constant 1.250000e-01 : f32
    %7 = vector.broadcast %cst_8 : f32 to vector<1x32xf32>
    %8 = arith.mulf %6, %7 : vector<1x32xf32>
    %9 = arith.mulf %2, %2 : vector<8x32xf32>
    %cst_9 = arith.constant dense<0.000000e+00> : vector<32xf32>
    %10 = vector.multi_reduction <add>, %9, %cst_9 [0] : vector<8x32xf32> to vector<32xf32>
    %11 = vector.shape_cast %10 : vector<32xf32> to vector<1x32xf32>
    %cst_10 = arith.constant 1.250000e-01 : f32
    %12 = vector.broadcast %cst_10 : f32 to vector<1x32xf32>
    %13 = arith.mulf %11, %12 : vector<1x32xf32>
    %14 = arith.mulf %8, %8 : vector<1x32xf32>
    %15 = arith.subf %13, %14 : vector<1x32xf32>
    %cst_11 = arith.constant 9.99999974E-6 : f32
    %16 = vector.broadcast %cst_11 : f32 to vector<1x32xf32>
    %17 = arith.addf %15, %16 : vector<1x32xf32>
    %18 = math.rsqrt %17 : vector<1x32xf32>
    %19 = arith.mulf %18, %3 : vector<1x32xf32>
    %20 = vector.broadcast %8 : vector<1x32xf32> to vector<8x32xf32>
    %21 = arith.subf %2, %20 : vector<8x32xf32>
    %22 = vector.broadcast %19 : vector<1x32xf32> to vector<8x32xf32>
    %23 = arith.mulf %21, %22 : vector<8x32xf32>
    %24 = vector.broadcast %4 : vector<1x32xf32> to vector<8x32xf32>
    %25 = arith.addf %23, %24 : vector<8x32xf32>
    %cst_12 = arith.constant 0.000000e+00 : f32
    %26 = vector.broadcast %cst_12 : f32 to vector<8x32xf32>
    %27 = arith.cmpf ogt, %25, %26 : vector<8x32xf32>
    %cst_13 = arith.constant 2.000000e-01 : f32
    %28 = vector.broadcast %cst_13 : f32 to vector<8x32xf32>
    %29 = arith.mulf %28, %25 : vector<8x32xf32>
    %30 = arith.select %27, %25, %29 : vector<8x32xi1>, vector<8x32xf32>
    %c0_14 = arith.constant 0 : index
    %c0_15 = arith.constant 0 : index
    %31 = vector.load %arg4[%c0_14, %c0_15] : memref<8x32xf32, #tpu.memory_space<vmem>>, vector<8x32xf32>
    tpu.vector_store %arg4[%c0_14, %c0_15], %30 {strides = array<i32>} : memref<8x32xf32, #tpu.memory_space<vmem>>, vector<8x32xf32>,
    return
  }
}

module attributes {stable_mosaic.version = 11 : i64} {
  func.func @_final_conv_t_kernel(%arg0: memref<1x512xbf16, #tpu.memory_space<vmem>>, %arg1: memref<512x2xbf16, #tpu.memory_space<vmem>>, %arg2: memref<1x2xf32, #tpu.memory_space<vmem>>) attributes {dimension_semantics = [], scalar_prefetch = 0 : i64, scratch_operands = 0 : i64, tpu.core_type = #tpu.core_type<tc>} {
    %c0 = arith.constant 0 : index
    %c0_0 = arith.constant 0 : index
    %0 = vector.load %arg0[%c0, %c0_0] : memref<1x512xbf16, #tpu.memory_space<vmem>>, vector<1x512xbf16>
    %c0_1 = arith.constant 0 : index
    %c0_2 = arith.constant 0 : index
    %1 = vector.load %arg1[%c0_1, %c0_2] : memref<512x2xbf16, #tpu.memory_space<vmem>>, vector<512x2xbf16>
    %cst = arith.constant dense<0.000000e+00> : vector<1x2xf32>
    %2 = tpu.matmul %0, %1, %cst {dimension_numbers = #tpu.dot_dimension_numbers<[1], [0], [0], [1], [0, 0, 1, 1], [], []>} : vector<1x512xbf16>, vector<512x2xbf16>, vector<1x2xf32> -> vector<1x2xf32>
    %c0_3 = arith.constant 0 : index
    %c0_4 = arith.constant 0 : index
    %3 = vector.load %arg2[%c0_3, %c0_4] : memref<1x2xf32, #tpu.memory_space<vmem>>, vector<1x2xf32>
    tpu.vector_store %arg2[%c0_3, %c0_4], %2 {strides = array<i32>} : memref<1x2xf32, #tpu.memory_space<vmem>>, vector<1x2xf32>,
    return
  }
}

</mosaic_0001>

<llo_original>
// kernel: discriminator_forward.4
$region0: #{discriminator_forward.4}
  #allocation0 [shape = 'u32[]', space=smem, size = 0x4, offset = 0x4, fixed_abs, tag = 'smem constant byte address 0x4 - core index']
  #allocation1 [shape = 'u32[144,128]{1,0:T(1,128)}', space=vmem, size = 0x12000, scoped, tag = 'internal scratch']
  %s0 = inlined_call_operand.vmem [shape: bf16[128,128], index: 0, kind: input, shape index: {}]
  %s1 = inlined_call_operand.vmem [shape: bf16[128,8], index: 1, kind: input, shape index: {}]
  %s2 = inlined_call_operand.vmem [shape: f32[1,8], index: 2, kind: input, shape index: {}]
  %s3 = inlined_call_operand.vmem [shape: f32[1,8], index: 3, kind: input, shape index: {}]
  %s4 = inlined_call_operand.vmem [shape: f32[128,8], index: 4, kind: output, shape index: {}]
  %s5 = sld [smem:[#allocation0]]
  $region26: #{discriminator_forward.4} parent=0
    _
  %s7 = ssub.s32 1, %s5
  %s8 = scalar_select 0, %s7, %s5
  // Predicated region
  $region2: #{discriminator_forward.4} parent=0 // pred_check
    _
  $region3: #{discriminator_forward.4} parent=0 // pred_check_branch
    %10 = sbr.rel (0) target = $region5
  $region4: #{discriminator_forward.4} parent=0 // pred_region
    _
  $region5: #{discriminator_forward.4} parent=0 // pred_fallthru
    _
  // Predicated region
  $region6: #{discriminator_forward.4} parent=0 // pred_check
    _
  $region7: #{discriminator_forward.4} parent=0 // pred_check_branch
    %12 = sbr.rel (0) target = $region9
  $region8: #{discriminator_forward.4} parent=0 // pred_region
    _
  $region9: #{discriminator_forward.4} parent=0 // pred_fallthru
    _
  // Predicated region
  $region10: #{discriminator_forward.4} parent=0 // pred_check
    _
  $region11: #{discriminator_forward.4} parent=0 // pred_check_branch
    %14 = sbr.rel (0) target = $region13
  $region12: #{discriminator_forward.4} parent=0 // pred_region
    _
  $region13: #{discriminator_forward.4} parent=0 // pred_fallthru
    _
  // Predicated region
  $region14: #{discriminator_forward.4} parent=0 // pred_check
    _
  $region15: #{discriminator_forward.4} parent=0 // pred_check_branch
    %16 = sbr.rel (0) target = $region17
  $region16: #{discriminator_forward.4} parent=0 // pred_region
    _
  $region17: #{discriminator_forward.4} parent=0 // pred_fallthru
    _
  %v18 = vld [vmem:[%s0] sm:$0xf]
  %v19 = vld [vmem:[%s0 + $0x4] sm:$0xf]
  %v20 = vld [vmem:[%s0 + $0x8] sm:$0xf]
  %v21 = vld [vmem:[%s0 + $0xc] sm:$0xf]
  %v22 = vld [vmem:[%s0 + $0x10] sm:$0xf]
  %v23 = vld [vmem:[%s0 + $0x14] sm:$0xf]
  %v24 = vld [vmem:[%s0 + $0x18] sm:$0xf]
  %v25 = vld [vmem:[%s0 + $0x1c] sm:$0xf]
  %v26 = vld [vmem:[%s0 + $0x20] sm:$0xf]
  %v27 = vld [vmem:[%s0 + $0x24] sm:$0xf]
  %v28 = vld [vmem:[%s0 + $0x28] sm:$0xf]
  %v29 = vld [vmem:[%s0 + $0x2c] sm:$0xf]
  %v30 = vld [vmem:[%s0 + $0x30] sm:$0xf]
  %v31 = vld [vmem:[%s0 + $0x34] sm:$0xf]
  %v32 = vld [vmem:[%s0 + $0x38] sm:$0xf]
  %v33 = vld [vmem:[%s0 + $0x3c] sm:$0xf]
  %v34 = vld [vmem:[%s1] sm:$0xf]
  %v35 = vld [vmem:[%s1 + $0x4] sm:$0xf]
  %v36 = vld [vmem:[%s1 + $0x8] sm:$0xf]
  %v37 = vld [vmem:[%s1 + $0xc] sm:$0xf]
  %v38 = vld [vmem:[%s1 + $0x10] sm:$0xf]
  %v39 = vld [vmem:[%s1 + $0x14] sm:$0xf]
  %v40 = vld [vmem:[%s1 + $0x18] sm:$0xf]
  %v41 = vld [vmem:[%s1 + $0x1c] sm:$0xf]
  %v42 = vld [vmem:[%s1 + $0x20] sm:$0xf]
  %v43 = vld [vmem:[%s1 + $0x24] sm:$0xf]
  %v44 = vld [vmem:[%s1 + $0x28] sm:$0xf]
  %v45 = vld [vmem:[%s1 + $0x2c] sm:$0xf]
  %v46 = vld [vmem:[%s1 + $0x30] sm:$0xf]
  %v47 = vld [vmem:[%s1 + $0x34] sm:$0xf]
  %v48 = vld [vmem:[%s1 + $0x38] sm:$0xf]
  %v49 = vld [vmem:[%s1 + $0x3c] sm:$0xf]
  %v66 = vunpack.c.l.b16 %v18
  %v67 = vunpack.c.l.b16 %v19
  %v68 = vunpack.c.l.b16 %v20
  %v69 = vunpack.c.l.b16 %v21
  %v70 = vunpack.c.l.b16 %v22
  %v71 = vunpack.c.l.b16 %v23
  %v72 = vunpack.c.l.b16 %v24
  %v73 = vunpack.c.l.b16 %v25
  %v74 = vunpack.c.l.b16 %v26
  %v75 = vunpack.c.l.b16 %v27
  %v76 = vunpack.c.l.b16 %v28
  %v77 = vunpack.c.l.b16 %v29
  %v78 = vunpack.c.l.b16 %v30
  %v79 = vunpack.c.l.b16 %v31
  %v80 = vunpack.c.l.b16 %v32
  %v81 = vunpack.c.l.b16 %v33
  %v82 = vpack.c.b16 %v67, %v66
  %v83 = vpack.c.b16 %v69, %v68
  %v84 = vpack.c.b16 %v71, %v70
  %v85 = vpack.c.b16 %v73, %v72
  %v86 = vpack.c.b16 %v75, %v74
  %v87 = vpack.c.b16 %v77, %v76
  %v88 = vpack.c.b16 %v79, %v78
  %v89 = vpack.c.b16 %v81, %v80
  %v114 = vunpack.c.l.b16 %v34
  %v115 = vunpack.c.l.b16 %v35
  %v116 = vunpack.c.l.b16 %v36
  %v117 = vunpack.c.l.b16 %v37
  %v118 = vunpack.c.l.b16 %v38
  %v119 = vunpack.c.l.b16 %v39
  %v120 = vunpack.c.l.b16 %v40
  %v121 = vunpack.c.l.b16 %v41
  %v122 = vunpack.c.l.b16 %v42
  %v123 = vunpack.c.l.b16 %v43
  %v124 = vunpack.c.l.b16 %v44
  %v125 = vunpack.c.l.b16 %v45
  %v126 = vunpack.c.l.b16 %v46
  %v127 = vunpack.c.l.b16 %v47
  %v128 = vunpack.c.l.b16 %v48
  %v129 = vunpack.c.l.b16 %v49
  %v130 = vpack.c.b16 %v115, %v114
  %v131 = vpack.c.b16 %v117, %v116
  %v132 = vpack.c.b16 %v119, %v118
  %v133 = vpack.c.b16 %v121, %v120
  %v134 = vpack.c.b16 %v123, %v122
  %v135 = vpack.c.b16 %v125, %v124
  %v136 = vpack.c.b16 %v127, %v126
  %v137 = vpack.c.b16 %v129, %v128
  %146 = vmatprep.subr.bf16.mxu0 0
  %147 = vmatpush1.bf16.msra.mxu0 %v130
  %148 = vmatprep.subr.bf16.mxu0 0
  %149 = vmatpush1.bf16.msra.mxu0 %v131
  %150 = vmatprep.subr.bf16.mxu0 0
  %151 = vmatpush1.bf16.msra.mxu0 %v132
  %152 = vmatprep.subr.bf16.mxu0 0
  %153 = vmatpush1.bf16.msra.mxu0 %v133
  %154 = vmatprep.subr.bf16.mxu0 0
  %155 = vmatpush1.bf16.msra.mxu0 %v134
  %156 = vmatprep.subr.bf16.mxu0 0
  %157 = vmatpush1.bf16.msra.mxu0 %v135
  %158 = vmatprep.subr.bf16.mxu0 0
  %159 = vmatpush1.bf16.msra.mxu0 %v136
  %160 = vmatprep.subr.bf16.mxu0 0
  %161 = vmatpush1.bf16.msra.mxu0 %v137
  %162 = vmatprep.subr.bf16.mxu0 0
  %163 = vmatpush1.bf16.msra.mxu0 0
  %164 = vmatprep.subr.bf16.mxu0 0
  %165 = vmatpush1.bf16.msra.mxu0 0
  %166 = vmatprep.subr.bf16.mxu0 0
  %167 = vmatpush1.bf16.msra.mxu0 0
  %168 = vmatprep.subr.bf16.mxu0 0
  %169 = vmatpush1.bf16.msra.mxu0 0
  %170 = vmatprep.subr.bf16.mxu0 0
  %171 = vmatpush1.bf16.msra.mxu0 0
  %172 = vmatprep.subr.bf16.mxu0 0
  %173 = vmatpush1.bf16.msra.mxu0 0
  %174 = vmatprep.subr.bf16.mxu0 0
  %175 = vmatpush1.bf16.msra.mxu0 0
  %176 = vmatprep.subr.bf16.mxu0 0
  %177 = vmatpush1.bf16.msra.mxu0 0
  %178 = vmatprep.mubr.bf16.mxu0 0
  %179 = vmatmul.mubr.bf16.gmra.mrb[0].mxu0 %v82
  %v180 = vpop.f32.mrb[0].mxu0
  %v181 = vadd.f32 0.0, %v180
  %v182 = vpop.f32.mrb[0].mxu0
  %v183 = vpop.f32.mrb[0].mxu0
  %v184 = vadd.f32 0.0, %v183
  %v185 = vpop.f32.mrb[0].mxu0
  %186 = vmatprep.mubr.bf16.mxu0 0
  %187 = vmatmul.mubr.bf16.gmra.mrb[0].mxu0 %v83
  %v188 = vpop.f32.mrb[0].mxu0
  %v189 = vadd.f32 0.0, %v188
  %v190 = vpop.f32.mrb[0].mxu0
  %v191 = vpop.f32.mrb[0].mxu0
  %v192 = vadd.f32 0.0, %v191
  %v193 = vpop.f32.mrb[0].mxu0
  %194 = vmatprep.mubr.bf16.mxu0 0
  %195 = vmatmul.mubr.bf16.gmra.mrb[0].mxu0 %v84
  %v196 = vpop.f32.mrb[0].mxu0
  %v197 = vadd.f32 0.0, %v196
  %v198 = vpop.f32.mrb[0].mxu0
  %v199 = vpop.f32.mrb[0].mxu0
  %v200 = vadd.f32 0.0, %v199
  %v201 = vpop.f32.mrb[0].mxu0
  %202 = vmatprep.mubr.bf16.mxu0 0
  %203 = vmatmul.mubr.bf16.gmra.mrb[0].mxu0 %v85
  %v204 = vpop.f32.mrb[0].mxu0
  %v205 = vadd.f32 0.0, %v204
  %v206 = vpop.f32.mrb[0].mxu0
  %v207 = vpop.f32.mrb[0].mxu0
  %v208 = vadd.f32 0.0, %v207
  %v209 = vpop.f32.mrb[0].mxu0
  %210 = vmatprep.mubr.bf16.mxu0 0
  %211 = vmatmul.mubr.bf16.gmra.mrb[0].mxu0 %v86
  %v212 = vpop.f32.mrb[0].mxu0
  %v213 = vadd.f32 0.0, %v212
  %v214 = vpop.f32.mrb[0].mxu0
  %v215 = vpop.f32.mrb[0].mxu0
  %v216 = vadd.f32 0.0, %v215
  %v217 = vpop.f32.mrb[0].mxu0
  %218 = vmatprep.mubr.bf16.mxu0 0
  %219 = vmatmul.mubr.bf16.gmra.mrb[0].mxu0 %v87
  %v220 = vpop.f32.mrb[0].mxu0
  %v221 = vadd.f32 0.0, %v220
  %v222 = vpop.f32.mrb[0].mxu0
  %v223 = vpop.f32.mrb[0].mxu0
  %v224 = vadd.f32 0.0, %v223
  %v225 = vpop.f32.mrb[0].mxu0
  %226 = vmatprep.mubr.bf16.mxu0 0
  %227 = vmatmul.mubr.bf16.gmra.mrb[0].mxu0 %v88
  %v228 = vpop.f32.mrb[0].mxu0
  %v229 = vadd.f32 0.0, %v228
  %v230 = vpop.f32.mrb[0].mxu0
  %v231 = vpop.f32.mrb[0].mxu0
  %v232 = vadd.f32 0.0, %v231
  %v233 = vpop.f32.mrb[0].mxu0
  %234 = vmatprep.mubr.bf16.mxu0 0
  %235 = vmatmul.mubr.bf16.gmra.mrb[0].mxu0 %v89
  %v236 = vpop.f32.mrb[0].mxu0
  %v237 = vadd.f32 0.0, %v236
  %v238 = vpop.f32.mrb[0].mxu0
  %v239 = vpop.f32.mrb[0].mxu0
  %v240 = vadd.f32 0.0, %v239
  %v241 = vpop.f32.mrb[0].mxu0
  %242 = vdwg.mxu0
  %v243 = vld [vmem:[%s2] sm:$0x1]
  %v244 = vld [vmem:[%s3] sm:$0x1]
  %vm245 = vcmask 64512
  %v246 = vsel %vm245, %v181, 0.0
  %v247 = vsel %vm245, %v184, 0.0
  %v248 = vadd.f32 %v246, %v247
  %v249 = vsel %vm245, %v189, 0.0
  %v250 = vadd.f32 %v248, %v249
  %v251 = vsel %vm245, %v192, 0.0
  %v252 = vadd.f32 %v250, %v251
  %v253 = vsel %vm245, %v197, 0.0
  %v254 = vadd.f32 %v252, %v253
  %v255 = vsel %vm245, %v200, 0.0
  %v256 = vadd.f32 %v254, %v255
  %v257 = vsel %vm245, %v205, 0.0
  %v258 = vadd.f32 %v256, %v257
  %v259 = vsel %vm245, %v208, 0.0
  %v260 = vadd.f32 %v258, %v259
  %v261 = vsel %vm245, %v213, 0.0
  %v262 = vadd.f32 %v260, %v261
  %v263 = vsel %vm245, %v216, 0.0
  %v264 = vadd.f32 %v262, %v263
  %v265 = vsel %vm245, %v221, 0.0
  %v266 = vadd.f32 %v264, %v265
  %v267 = vsel %vm245, %v224, 0.0
  %v268 = vadd.f32 %v266, %v267
  %v269 = vsel %vm245, %v229, 0.0
  %v270 = vadd.f32 %v268, %v269
  %v271 = vsel %vm245, %v232, 0.0
  %v272 = vadd.f32 %v270, %v271
  %v273 = vsel %vm245, %v237, 0.0
  %v274 = vadd.f32 %v272, %v273
  %v275 = vsel %vm245, %v240, 0.0
  %v276 = vadd.f32 %v274, %v275
  %v277 = vrot.slane %v276, 4
  %v278 = vadd.f32 %v276, %v277
  %v279 = vrot.slane %v278, 2
  %v280 = vadd.f32 %v278, %v279
  %v281 = vrot.slane %v280, 1
  %v282 = vadd.f32 %v280, %v281
  %v283 = vmul.f32 %v282, 0.0078125
  %v284 = vmul.f32 %v181, %v181
  %v285 = vmul.f32 %v184, %v184
  %v286 = vmul.f32 %v189, %v189
  %v287 = vmul.f32 %v192, %v192
  %v288 = vmul.f32 %v197, %v197
  %v289 = vmul.f32 %v200, %v200
  %v290 = vmul.f32 %v205, %v205
  %v291 = vmul.f32 %v208, %v208
  %v292 = vmul.f32 %v213, %v213
  %v293 = vmul.f32 %v216, %v216
  %v294 = vmul.f32 %v221, %v221
  %v295 = vmul.f32 %v224, %v224
  %v296 = vmul.f32 %v229, %v229
  %v297 = vmul.f32 %v232, %v232
  %v298 = vmul.f32 %v237, %v237
  %v299 = vmul.f32 %v240, %v240
  %v300 = vsel %vm245, %v284, 0.0
  %v301 = vsel %vm245, %v285, 0.0
  %v302 = vadd.f32 %v300, %v301
  %v303 = vsel %vm245, %v286, 0.0
  %v304 = vadd.f32 %v302, %v303
  %v305 = vsel %vm245, %v287, 0.0
  %v306 = vadd.f32 %v304, %v305
  %v307 = vsel %vm245, %v288, 0.0
  %v308 = vadd.f32 %v306, %v307
  %v309 = vsel %vm245, %v289, 0.0
  %v310 = vadd.f32 %v308, %v309
  %v311 = vsel %vm245, %v290, 0.0
  %v312 = vadd.f32 %v310, %v311
  %v313 = vsel %vm245, %v291, 0.0
  %v314 = vadd.f32 %v312, %v313
  %v315 = vsel %vm245, %v292, 0.0
  %v316 = vadd.f32 %v314, %v315
  %v317 = vsel %vm245, %v293, 0.0
  %v318 = vadd.f32 %v316, %v317
  %v319 = vsel %vm245, %v294, 0.0
  %v320 = vadd.f32 %v318, %v319
  %v321 = vsel %vm245, %v295, 0.0
  %v322 = vadd.f32 %v320, %v321
  %v323 = vsel %vm245, %v296, 0.0
  %v324 = vadd.f32 %v322, %v323
  %v325 = vsel %vm245, %v297, 0.0
  %v326 = vadd.f32 %v324, %v325
  %v327 = vsel %vm245, %v298, 0.0
  %v328 = vadd.f32 %v326, %v327
  %v329 = vsel %vm245, %v299, 0.0
  %v330 = vadd.f32 %v328, %v329
  %v331 = vrot.slane %v330, 4
  %v332 = vadd.f32 %v330, %v331
  %v333 = vrot.slane %v332, 2
  %v334 = vadd.f32 %v332, %v333
  %v335 = vrot.slane %v334, 1
  %v336 = vadd.f32 %v334, %v335
  %v337 = vmul.f32 %v336, 0.0078125
  %v338 = vmul.f32 %v283, %v283
  %v339 = vsub.f32 %v337, %v338
  %v340 = vadd.f32 %v339, 1e-05
  %v341 = vrsqrt.pop %v340
  %v342 = vmul.f32 %v341, %v243
  %v343 = vsub.f32 %v181, %v283
  %v344 = vsub.f32 %v184, %v283
  %v345 = vsub.f32 %v189, %v283
  %v346 = vsub.f32 %v192, %v283
  %v347 = vsub.f32 %v197, %v283
  %v348 = vsub.f32 %v200, %v283
  %v349 = vsub.f32 %v205, %v283
  %v350 = vsub.f32 %v208, %v283
  %v351 = vsub.f32 %v213, %v283
  %v352 = vsub.f32 %v216, %v283
  %v353 = vsub.f32 %v221, %v283
  %v354 = vsub.f32 %v224, %v283
  %v355 = vsub.f32 %v229, %v283
  %v356 = vsub.f32 %v232, %v283
  %v357 = vsub.f32 %v237, %v283
  %v358 = vsub.f32 %v240, %v283
  %v359 = vlaneseq
  %v360 = vshrl.u32 %v359, 7
  %v361 = vsub.s32 0, %v360
  %v362 = vrot.slane %v342, %v361
  %v363 = vmul.f32 %v343, %v362
  %v364 = vmul.f32 %v344, %v362
  %v365 = vmul.f32 %v345, %v362
  %v366 = vmul.f32 %v346, %v362
  %v367 = vmul.f32 %v347, %v362
  %v368 = vmul.f32 %v348, %v362
  %v369 = vmul.f32 %v349, %v362
  %v370 = vmul.f32 %v350, %v362
  %v371 = vmul.f32 %v351, %v362
  %v372 = vmul.f32 %v352, %v362
  %v373 = vmul.f32 %v353, %v362
  %v374 = vmul.f32 %v354, %v362
  %v375 = vmul.f32 %v355, %v362
  %v376 = vmul.f32 %v356, %v362
  %v377 = vmul.f32 %v357, %v362
  %v378 = vmul.f32 %v358, %v362
  %v380 = vlaneseq
  %v381 = vshrl.u32 %v380, 7
  %v382 = vsub.s32 0, %v381
  %v383 = vrot.slane %v244, %v382
  %v385 = vadd.f32 %v363, %v383
  %v386 = vadd.f32 %v364, %v383
  %v387 = vadd.f32 %v365, %v383
  %v388 = vadd.f32 %v366, %v383
  %v389 = vadd.f32 %v367, %v383
  %v390 = vadd.f32 %v368, %v383
  %v391 = vadd.f32 %v369, %v383
  %v392 = vadd.f32 %v370, %v383
  %v393 = vadd.f32 %v371, %v383
  %v394 = vadd.f32 %v372, %v383
  %v395 = vadd.f32 %v373, %v383
  %v396 = vadd.f32 %v374, %v383
  %v397 = vadd.f32 %v375, %v383
  %v398 = vadd.f32 %v376, %v383
  %v399 = vadd.f32 %v377, %v383
  %v400 = vadd.f32 %v378, %v383
  %vm401 = vcmp.gt.f32.partialorder %v385, 0.0
  %vm402 = vcmp.gt.f32.partialorder %v386, 0.0
  %vm403 = vcmp.gt.f32.partialorder %v387, 0.0
  %vm404 = vcmp.gt.f32.partialorder %v388, 0.0
  %vm405 = vcmp.gt.f32.partialorder %v389, 0.0
  %vm406 = vcmp.gt.f32.partialorder %v390, 0.0
  %vm407 = vcmp.gt.f32.partialorder %v391, 0.0
  %vm408 = vcmp.gt.f32.partialorder %v392, 0.0
  %vm409 = vcmp.gt.f32.partialorder %v393, 0.0
  %vm410 = vcmp.gt.f32.partialorder %v394, 0.0
  %vm411 = vcmp.gt.f32.partialorder %v395, 0.0
  %vm412 = vcmp.gt.f32.partialorder %v396, 0.0
  %vm413 = vcmp.gt.f32.partialorder %v397, 0.0
  %vm414 = vcmp.gt.f32.partialorder %v398, 0.0
  %vm415 = vcmp.gt.f32.partialorder %v399, 0.0
  %vm416 = vcmp.gt.f32.partialorder %v400, 0.0
  %v417 = vmul.f32 %v385, 0.2
  %v418 = vmul.f32 %v386, 0.2
  %v419 = vmul.f32 %v387, 0.2
  %v420 = vmul.f32 %v388, 0.2
  %v421 = vmul.f32 %v389, 0.2
  %v422 = vmul.f32 %v390, 0.2
  %v423 = vmul.f32 %v391, 0.2
  %v424 = vmul.f32 %v392, 0.2
  %v425 = vmul.f32 %v393, 0.2
  %v426 = vmul.f32 %v394, 0.2
  %v427 = vmul.f32 %v395, 0.2
  %v428 = vmul.f32 %v396, 0.2
  %v429 = vmul.f32 %v397, 0.2
  %v430 = vmul.f32 %v398, 0.2
  %v431 = vmul.f32 %v399, 0.2
  %v432 = vmul.f32 %v400, 0.2
  %v433 = vsel %vm401, %v385, %v417
  %v434 = vsel %vm402, %v386, %v418
  %v435 = vsel %vm403, %v387, %v419
  %v436 = vsel %vm404, %v388, %v420
  %v437 = vsel %vm405, %v389, %v421
  %v438 = vsel %vm406, %v390, %v422
  %v439 = vsel %vm407, %v391, %v423
  %v440 = vsel %vm408, %v392, %v424
  %v441 = vsel %vm409, %v393, %v425
  %v442 = vsel %vm410, %v394, %v426
  %v443 = vsel %vm411, %v395, %v427
  %v444 = vsel %vm412, %v396, %v428
  %v445 = vsel %vm413, %v397, %v429
  %v446 = vsel %vm414, %v398, %v430
  %v447 = vsel %vm415, %v399, %v431
  %v448 = vsel %vm416, %v400, %v432
  %449 = vst.msk [vmem:[%s4] sm:$0xff] %vm245, %v433
  %450 = vst.msk [vmem:[%s4 + $0x8] sm:$0xff] %vm245, %v434
  %451 = vst.msk [vmem:[%s4 + $0x10] sm:$0xff] %vm245, %v435
  %452 = vst.msk [vmem:[%s4 + $0x18] sm:$0xff] %vm245, %v436
  %453 = vst.msk [vmem:[%s4 + $0x20] sm:$0xff] %vm245, %v437
  %454 = vst.msk [vmem:[%s4 + $0x28] sm:$0xff] %vm245, %v438
  %455 = vst.msk [vmem:[%s4 + $0x30] sm:$0xff] %vm245, %v439
  %456 = vst.msk [vmem:[%s4 + $0x38] sm:$0xff] %vm245, %v440
  %457 = vst.msk [vmem:[%s4 + $0x40] sm:$0xff] %vm245, %v441
  %458 = vst.msk [vmem:[%s4 + $0x48] sm:$0xff] %vm245, %v442
  %459 = vst.msk [vmem:[%s4 + $0x50] sm:$0xff] %vm245, %v443
  %460 = vst.msk [vmem:[%s4 + $0x58] sm:$0xff] %vm245, %v444
  %461 = vst.msk [vmem:[%s4 + $0x60] sm:$0xff] %vm245, %v445
  %462 = vst.msk [vmem:[%s4 + $0x68] sm:$0xff] %vm245, %v446
  %463 = vst.msk [vmem:[%s4 + $0x70] sm:$0xff] %vm245, %v447
  %464 = vst.msk [vmem:[%s4 + $0x78] sm:$0xff] %vm245, %v448
  // Predicated region
  $region18: #{discriminator_forward.4} parent=0 // pred_check
    _
  $region19: #{discriminator_forward.4} parent=0 // pred_check_branch
    %466 = sbr.rel (0) target = $region21
  $region20: #{discriminator_forward.4} parent=0 // pred_region
    _
  $region21: #{discriminator_forward.4} parent=0 // pred_fallthru
    _
  // Predicated region
  $region22: #{discriminator_forward.4} parent=0 // pred_check
    _
  $region23: #{discriminator_forward.4} parent=0 // pred_check_branch
    %468 = sbr.rel (0) target = $region25
  $region24: #{discriminator_forward.4} parent=0 // pred_region
    _
  $region25: #{discriminator_forward.4} parent=0 // pred_fallthru
    _

// kernel: discriminator_forward.5
$region0: #{discriminator_forward.5}
  #allocation0 [shape = 'u32[]', space=smem, size = 0x4, offset = 0x4, fixed_abs, tag = 'smem constant byte address 0x4 - core index']
  #allocation1 [shape = 'u32[144,128]{1,0:T(1,128)}', space=vmem, size = 0x12000, scoped, tag = 'internal scratch']
  %s0 = inlined_call_operand.vmem [shape: bf16[32,128], index: 0, kind: input, shape index: {}]
  %s1 = inlined_call_operand.vmem [shape: bf16[128,16], index: 1, kind: input, shape index: {}]
  %s2 = inlined_call_operand.vmem [shape: f32[1,16], index: 2, kind: input, shape index: {}]
  %s3 = inlined_call_operand.vmem [shape: f32[1,16], index: 3, kind: input, shape index: {}]
  %s4 = inlined_call_operand.vmem [shape: f32[32,16], index: 4, kind: output, shape index: {}]
  %s5 = sld [smem:[#allocation0]]
  $region26: #{discriminator_forward.5} parent=0
    _
  %s7 = ssub.s32 1, %s5
  %s8 = scalar_select 0, %s7, %s5
  // Predicated region
  $region2: #{discriminator_forward.5} parent=0 // pred_check
    _
  $region3: #{discriminator_forward.5} parent=0 // pred_check_branch
    %10 = sbr.rel (0) target = $region5
  $region4: #{discriminator_forward.5} parent=0 // pred_region
    _
  $region5: #{discriminator_forward.5} parent=0 // pred_fallthru
    _
  // Predicated region
  $region6: #{discriminator_forward.5} parent=0 // pred_check
    _
  $region7: #{discriminator_forward.5} parent=0 // pred_check_branch
    %12 = sbr.rel (0) target = $region9
  $region8: #{discriminator_forward.5} parent=0 // pred_region
    _
  $region9: #{discriminator_forward.5} parent=0 // pred_fallthru
    _
  // Predicated region
  $region10: #{discriminator_forward.5} parent=0 // pred_check
    _
  $region11: #{discriminator_forward.5} parent=0 // pred_check_branch
    %14 = sbr.rel (0) target = $region13
  $region12: #{discriminator_forward.5} parent=0 // pred_region
    _
  $region13: #{discriminator_forward.5} parent=0 // pred_fallthru
    _
  // Predicated region
  $region14: #{discriminator_forward.5} parent=0 // pred_check
    _
  $region15: #{discriminator_forward.5} parent=0 // pred_check_branch
    %16 = sbr.rel (0) target = $region17
  $region16: #{discriminator_forward.5} parent=0 // pred_region
    _
  $region17: #{discriminator_forward.5} parent=0 // pred_fallthru
    _
  %v18 = vld [vmem:[%s0] sm:$0xf]
  %v19 = vld [vmem:[%s0 + $0x4] sm:$0xf]
  %v20 = vld [vmem:[%s0 + $0x8] sm:$0xf]
  %v21 = vld [vmem:[%s0 + $0xc] sm:$0xf]
  %v22 = vld [vmem:[%s1] sm:$0xf]
  %v23 = vld [vmem:[%s1 + $0x4] sm:$0xf]
  %v24 = vld [vmem:[%s1 + $0x8] sm:$0xf]
  %v25 = vld [vmem:[%s1 + $0xc] sm:$0xf]
  %v26 = vld [vmem:[%s1 + $0x10] sm:$0xf]
  %v27 = vld [vmem:[%s1 + $0x14] sm:$0xf]
  %v28 = vld [vmem:[%s1 + $0x18] sm:$0xf]
  %v29 = vld [vmem:[%s1 + $0x1c] sm:$0xf]
  %v30 = vld [vmem:[%s1 + $0x20] sm:$0xf]
  %v31 = vld [vmem:[%s1 + $0x24] sm:$0xf]
  %v32 = vld [vmem:[%s1 + $0x28] sm:$0xf]
  %v33 = vld [vmem:[%s1 + $0x2c] sm:$0xf]
  %v34 = vld [vmem:[%s1 + $0x30] sm:$0xf]
  %v35 = vld [vmem:[%s1 + $0x34] sm:$0xf]
  %v36 = vld [vmem:[%s1 + $0x38] sm:$0xf]
  %v37 = vld [vmem:[%s1 + $0x3c] sm:$0xf]
  %v42 = vunpack.c.l.b16 %v18
  %v43 = vunpack.c.l.b16 %v19
  %v44 = vunpack.c.l.b16 %v20
  %v45 = vunpack.c.l.b16 %v21
  %v46 = vpack.c.b16 %v43, %v42
  %v47 = vpack.c.b16 %v45, %v44
  %v66 = vunpack.c.l.b16 %v22
  %v67 = vunpack.c.l.b16 %v23
  %v68 = vunpack.c.l.b16 %v24
  %v69 = vunpack.c.l.b16 %v25
  %v70 = vunpack.c.l.b16 %v26
  %v71 = vunpack.c.l.b16 %v27
  %v72 = vunpack.c.l.b16 %v28
  %v73 = vunpack.c.l.b16 %v29
  %v74 = vunpack.c.l.b16 %v30
  %v75 = vunpack.c.l.b16 %v31
  %v76 = vunpack.c.l.b16 %v32
  %v77 = vunpack.c.l.b16 %v33
  %v78 = vunpack.c.l.b16 %v34
  %v79 = vunpack.c.l.b16 %v35
  %v80 = vunpack.c.l.b16 %v36
  %v81 = vunpack.c.l.b16 %v37
  %v82 = vpack.c.b16 %v67, %v66
  %v83 = vpack.c.b16 %v69, %v68
  %v84 = vpack.c.b16 %v71, %v70
  %v85 = vpack.c.b16 %v73, %v72
  %v86 = vpack.c.b16 %v75, %v74
  %v87 = vpack.c.b16 %v77, %v76
  %v88 = vpack.c.b16 %v79, %v78
  %v89 = vpack.c.b16 %v81, %v80
  %98 = vmatprep.subr.bf16.mxu0 0
  %99 = vmatpush1.bf16.msra.mxu0 %v82
  %100 = vmatprep.subr.bf16.mxu0 0
  %101 = vmatpush1.bf16.msra.mxu0 %v83
  %102 = vmatprep.subr.bf16.mxu0 0
  %103 = vmatpush1.bf16.msra.mxu0 %v84
  %104 = vmatprep.subr.bf16.mxu0 0
  %105 = vmatpush1.bf16.msra.mxu0 %v85
  %106 = vmatprep.subr.bf16.mxu0 0
  %107 = vmatpush1.bf16.msra.mxu0 %v86
  %108 = vmatprep.subr.bf16.mxu0 0
  %109 = vmatpush1.bf16.msra.mxu0 %v87
  %110 = vmatprep.subr.bf16.mxu0 0
  %111 = vmatpush1.bf16.msra.mxu0 %v88
  %112 = vmatprep.subr.bf16.mxu0 0
  %113 = vmatpush1.bf16.msra.mxu0 %v89
  %114 = vmatprep.subr.bf16.mxu0 0
  %115 = vmatpush1.bf16.msra.mxu0 0
  %116 = vmatprep.subr.bf16.mxu0 0
  %117 = vmatpush1.bf16.msra.mxu0 0
  %118 = vmatprep.subr.bf16.mxu0 0
  %119 = vmatpush1.bf16.msra.mxu0 0
  %120 = vmatprep.subr.bf16.mxu0 0
  %121 = vmatpush1.bf16.msra.mxu0 0
  %122 = vmatprep.subr.bf16.mxu0 0
  %123 = vmatpush1.bf16.msra.mxu0 0
  %124 = vmatprep.subr.bf16.mxu0 0
  %125 = vmatpush1.bf16.msra.mxu0 0
  %126 = vmatprep.subr.bf16.mxu0 0
  %127 = vmatpush1.bf16.msra.mxu0 0
  %128 = vmatprep.subr.bf16.mxu0 0
  %129 = vmatpush1.bf16.msra.mxu0 0
  %130 = vmatprep.mubr.bf16.mxu0 0
  %131 = vmatmul.mubr.bf16.gmra.mrb[0].mxu0 %v46
  %v132 = vpop.f32.mrb[0].mxu0
  %v133 = vadd.f32 0.0, %v132
  %v134 = vpop.f32.mrb[0].mxu0
  %v135 = vpop.f32.mrb[0].mxu0
  %v136 = vadd.f32 0.0, %v135
  %v137 = vpop.f32.mrb[0].mxu0
  %138 = vmatprep.mubr.bf16.mxu0 0
  %139 = vmatmul.mubr.bf16.gmra.mrb[0].mxu0 %v47
  %v140 = vpop.f32.mrb[0].mxu0
  %v141 = vadd.f32 0.0, %v140
  %v142 = vpop.f32.mrb[0].mxu0
  %v143 = vpop.f32.mrb[0].mxu0
  %v144 = vadd.f32 0.0, %v143
  %v145 = vpop.f32.mrb[0].mxu0
  %146 = vdwg.mxu0
  %v147 = vld [vmem:[%s2] sm:$0x1]
  %v148 = vld [vmem:[%s3] sm:$0x1]
  %vm149 = vcmask 130048
  %v150 = vsel %vm149, %v133, 0.0
  %v151 = vsel %vm149, %v136, 0.0
  %v152 = vadd.f32 %v150, %v151
  %v153 = vsel %vm149, %v141, 0.0
  %v154 = vadd.f32 %v152, %v153
  %v155 = vsel %vm149, %v144, 0.0
  %v156 = vadd.f32 %v154, %v155
  %v157 = vrot.slane %v156, 4
  %v158 = vadd.f32 %v156, %v157
  %v159 = vrot.slane %v158, 2
  %v160 = vadd.f32 %v158, %v159
  %v161 = vrot.slane %v160, 1
  %v162 = vadd.f32 %v160, %v161
  %v163 = vmul.f32 %v162, 0.03125
  %v164 = vmul.f32 %v133, %v133
  %v165 = vmul.f32 %v136, %v136
  %v166 = vmul.f32 %v141, %v141
  %v167 = vmul.f32 %v144, %v144
  %v168 = vsel %vm149, %v164, 0.0
  %v169 = vsel %vm149, %v165, 0.0
  %v170 = vadd.f32 %v168, %v169
  %v171 = vsel %vm149, %v166, 0.0
  %v172 = vadd.f32 %v170, %v171
  %v173 = vsel %vm149, %v167, 0.0
  %v174 = vadd.f32 %v172, %v173
  %v175 = vrot.slane %v174, 4
  %v176 = vadd.f32 %v174, %v175
  %v177 = vrot.slane %v176, 2
  %v178 = vadd.f32 %v176, %v177
  %v179 = vrot.slane %v178, 1
  %v180 = vadd.f32 %v178, %v179
  %v181 = vmul.f32 %v180, 0.03125
  %v182 = vmul.f32 %v163, %v163
  %v183 = vsub.f32 %v181, %v182
  %v184 = vadd.f32 %v183, 1e-05
  %v185 = vrsqrt.pop %v184
  %v186 = vmul.f32 %v185, %v147
  %v187 = vsub.f32 %v133, %v163
  %v188 = vsub.f32 %v136, %v163
  %v189 = vsub.f32 %v141, %v163
  %v190 = vsub.f32 %v144, %v163
  %v191 = vlaneseq
  %v192 = vshrl.u32 %v191, 7
  %v193 = vsub.s32 0, %v192
  %v194 = vrot.slane %v186, %v193
  %v195 = vmul.f32 %v187, %v194
  %v196 = vmul.f32 %v188, %v194
  %v197 = vmul.f32 %v189, %v194
  %v198 = vmul.f32 %v190, %v194
  %v200 = vlaneseq
  %v201 = vshrl.u32 %v200, 7
  %v202 = vsub.s32 0, %v201
  %v203 = vrot.slane %v148, %v202
  %v205 = vadd.f32 %v195, %v203
  %v206 = vadd.f32 %v196, %v203
  %v207 = vadd.f32 %v197, %v203
  %v208 = vadd.f32 %v198, %v203
  %vm209 = vcmp.gt.f32.partialorder %v205, 0.0
  %vm210 = vcmp.gt.f32.partialorder %v206, 0.0
  %vm211 = vcmp.gt.f32.partialorder %v207, 0.0
  %vm212 = vcmp.gt.f32.partialorder %v208, 0.0
  %v213 = vmul.f32 %v205, 0.2
  %v214 = vmul.f32 %v206, 0.2
  %v215 = vmul.f32 %v207, 0.2
  %v216 = vmul.f32 %v208, 0.2
  %v217 = vsel %vm209, %v205, %v213
  %v218 = vsel %vm210, %v206, %v214
  %v219 = vsel %vm211, %v207, %v215
  %v220 = vsel %vm212, %v208, %v216
  %221 = vst.msk [vmem:[%s4] sm:$0xff] %vm149, %v217
  %222 = vst.msk [vmem:[%s4 + $0x8] sm:$0xff] %vm149, %v218
  %223 = vst.msk [vmem:[%s4 + $0x10] sm:$0xff] %vm149, %v219
  %224 = vst.msk [vmem:[%s4 + $0x18] sm:$0xff] %vm149, %v220
  // Predicated region
  $region18: #{discriminator_forward.5} parent=0 // pred_check
    _
  $region19: #{discriminator_forward.5} parent=0 // pred_check_branch
    %226 = sbr.rel (0) target = $region21
  $region20: #{discriminator_forward.5} parent=0 // pred_region
    _
  $region21: #{discriminator_forward.5} parent=0 // pred_fallthru
    _
  // Predicated region
  $region22: #{discriminator_forward.5} parent=0 // pred_check
    _
  $region23: #{discriminator_forward.5} parent=0 // pred_check_branch
    %228 = sbr.rel (0) target = $region25
  $region24: #{discriminator_forward.5} parent=0 // pred_region
    _
  $region25: #{discriminator_forward.5} parent=0 // pred_fallthru
    _

// kernel: discriminator_forward.6
$region0: #{discriminator_forward.6}
  #allocation0 [shape = 'u32[]', space=smem, size = 0x4, offset = 0x4, fixed_abs, tag = 'smem constant byte address 0x4 - core index']
  #allocation1 [shape = 'u32[144,128]{1,0:T(1,128)}', space=vmem, size = 0x12000, scoped, tag = 'internal scratch']
  %s0 = inlined_call_operand.vmem [shape: bf16[8,256], index: 0, kind: input, shape index: {}]
  %s1 = inlined_call_operand.vmem [shape: bf16[256,32], index: 1, kind: input, shape index: {}]
  %s2 = inlined_call_operand.vmem [shape: f32[1,32], index: 2, kind: input, shape index: {}]
  %s3 = inlined_call_operand.vmem [shape: f32[1,32], index: 3, kind: input, shape index: {}]
  %s4 = inlined_call_operand.vmem [shape: f32[8,32], index: 4, kind: output, shape index: {}]
  %s5 = sld [smem:[#allocation0]]
  $region26: #{discriminator_forward.6} parent=0
    _
  %s7 = ssub.s32 1, %s5
  %s8 = scalar_select 0, %s7, %s5
  // Predicated region
  $region2: #{discriminator_forward.6} parent=0 // pred_check
    _
  $region3: #{discriminator_forward.6} parent=0 // pred_check_branch
    %10 = sbr.rel (0) target = $region5
  $region4: #{discriminator_forward.6} parent=0 // pred_region
    _
  $region5: #{discriminator_forward.6} parent=0 // pred_fallthru
    _
  // Predicated region
  $region6: #{discriminator_forward.6} parent=0 // pred_check
    _
  $region7: #{discriminator_forward.6} parent=0 // pred_check_branch
    %12 = sbr.rel (0) target = $region9
  $region8: #{discriminator_forward.6} parent=0 // pred_region
    _
  $region9: #{discriminator_forward.6} parent=0 // pred_fallthru
    _
  // Predicated region
  $region10: #{discriminator_forward.6} parent=0 // pred_check
    _
  $region11: #{discriminator_forward.6} parent=0 // pred_check_branch
    %14 = sbr.rel (0) target = $region13
  $region12: #{discriminator_forward.6} parent=0 // pred_region
    _
  $region13: #{discriminator_forward.6} parent=0 // pred_fallthru
    _
  // Predicated region
  $region14: #{discriminator_forward.6} parent=0 // pred_check
    _
  $region15: #{discriminator_forward.6} parent=0 // pred_check_branch
    %16 = sbr.rel (0) target = $region17
  $region16: #{discriminator_forward.6} parent=0 // pred_region
    _
  $region17: #{discriminator_forward.6} parent=0 // pred_fallthru
    _
  %v18 = vld [vmem:[%s0] sm:$0xff]
  %v19 = vld [vmem:[%s1] sm:$0xf]
  %v20 = vld [vmem:[%s1 + $0x4] sm:$0xf]
  %v21 = vld [vmem:[%s1 + $0x8] sm:$0xf]
  %v22 = vld [vmem:[%s1 + $0xc] sm:$0xf]
  %v23 = vld [vmem:[%s1 + $0x10] sm:$0xf]
  %v24 = vld [vmem:[%s1 + $0x14] sm:$0xf]
  %v25 = vld [vmem:[%s1 + $0x18] sm:$0xf]
  %v26 = vld [vmem:[%s1 + $0x1c] sm:$0xf]
  %v27 = vld [vmem:[%s1 + $0x20] sm:$0xf]
  %v28 = vld [vmem:[%s1 + $0x24] sm:$0xf]
  %v29 = vld [vmem:[%s1 + $0x28] sm:$0xf]
  %v30 = vld [vmem:[%s1 + $0x2c] sm:$0xf]
  %v31 = vld [vmem:[%s1 + $0x30] sm:$0xf]
  %v32 = vld [vmem:[%s1 + $0x34] sm:$0xf]
  %v33 = vld [vmem:[%s1 + $0x38] sm:$0xf]
  %v34 = vld [vmem:[%s1 + $0x3c] sm:$0xf]
  %v35 = vld [vmem:[%s1 + $0x40] sm:$0xf]
  %v36 = vld [vmem:[%s1 + $0x44] sm:$0xf]
  %v37 = vld [vmem:[%s1 + $0x48] sm:$0xf]
  %v38 = vld [vmem:[%s1 + $0x4c] sm:$0xf]
  %v39 = vld [vmem:[%s1 + $0x50] sm:$0xf]
  %v40 = vld [vmem:[%s1 + $0x54] sm:$0xf]
  %v41 = vld [vmem:[%s1 + $0x58] sm:$0xf]
  %v42 = vld [vmem:[%s1 + $0x5c] sm:$0xf]
  %v43 = vld [vmem:[%s1 + $0x60] sm:$0xf]
  %v44 = vld [vmem:[%s1 + $0x64] sm:$0xf]
  %v45 = vld [vmem:[%s1 + $0x68] sm:$0xf]
  %v46 = vld [vmem:[%s1 + $0x6c] sm:$0xf]
  %v47 = vld [vmem:[%s1 + $0x70] sm:$0xf]
  %v48 = vld [vmem:[%s1 + $0x74] sm:$0xf]
  %v49 = vld [vmem:[%s1 + $0x78] sm:$0xf]
  %v50 = vld [vmem:[%s1 + $0x7c] sm:$0xf]
  %v52 = vunpack.c.l.b16 %v18
  %v53 = vunpack.c.h.b16 %v18
  %v54 = vpack.c.b16 %v52, %v52
  %v55 = vpack.c.b16 %v53, %v53
  %v90 = vunpack.c.l.b16 %v19
  %v91 = vunpack.c.l.b16 %v20
  %v92 = vunpack.c.l.b16 %v21
  %v93 = vunpack.c.l.b16 %v22
  %v94 = vunpack.c.l.b16 %v23
  %v95 = vunpack.c.l.b16 %v24
  %v96 = vunpack.c.l.b16 %v25
  %v97 = vunpack.c.l.b16 %v26
  %v98 = vunpack.c.l.b16 %v27
  %v99 = vunpack.c.l.b16 %v28
  %v100 = vunpack.c.l.b16 %v29
  %v101 = vunpack.c.l.b16 %v30
  %v102 = vunpack.c.l.b16 %v31
  %v103 = vunpack.c.l.b16 %v32
  %v104 = vunpack.c.l.b16 %v33
  %v105 = vunpack.c.l.b16 %v34
  %v106 = vunpack.c.l.b16 %v35
  %v107 = vunpack.c.l.b16 %v36
  %v108 = vunpack.c.l.b16 %v37
  %v109 = vunpack.c.l.b16 %v38
  %v110 = vunpack.c.l.b16 %v39
  %v111 = vunpack.c.l.b16 %v40
  %v112 = vunpack.c.l.b16 %v41
  %v113 = vunpack.c.l.b16 %v42
  %v114 = vunpack.c.l.b16 %v43
  %v115 = vunpack.c.l.b16 %v44
  %v116 = vunpack.c.l.b16 %v45
  %v117 = vunpack.c.l.b16 %v46
  %v118 = vunpack.c.l.b16 %v47
  %v119 = vunpack.c.l.b16 %v48
  %v120 = vunpack.c.l.b16 %v49
  %v121 = vunpack.c.l.b16 %v50
  %v122 = vpack.c.b16 %v91, %v90
  %v123 = vpack.c.b16 %v93, %v92
  %v124 = vpack.c.b16 %v95, %v94
  %v125 = vpack.c.b16 %v97, %v96
  %v126 = vpack.c.b16 %v99, %v98
  %v127 = vpack.c.b16 %v101, %v100
  %v128 = vpack.c.b16 %v103, %v102
  %v129 = vpack.c.b16 %v105, %v104
  %v130 = vpack.c.b16 %v107, %v106
  %v131 = vpack.c.b16 %v109, %v108
  %v132 = vpack.c.b16 %v111, %v110
  %v133 = vpack.c.b16 %v113, %v112
  %v134 = vpack.c.b16 %v115, %v114
  %v135 = vpack.c.b16 %v117, %v116
  %v136 = vpack.c.b16 %v119, %v118
  %v137 = vpack.c.b16 %v121, %v120
  %154 = vmatprep.subr.bf16.mxu0 0
  %155 = vmatpush1.bf16.msra.mxu0 %v122
  %156 = vmatprep.subr.bf16.mxu0 0
  %157 = vmatpush1.bf16.msra.mxu0 %v123
  %158 = vmatprep.subr.bf16.mxu0 0
  %159 = vmatpush1.bf16.msra.mxu0 %v124
  %160 = vmatprep.subr.bf16.mxu0 0
  %161 = vmatpush1.bf16.msra.mxu0 %v125
  %162 = vmatprep.subr.bf16.mxu0 0
  %163 = vmatpush1.bf16.msra.mxu0 %v126
  %164 = vmatprep.subr.bf16.mxu0 0
  %165 = vmatpush1.bf16.msra.mxu0 %v127
  %166 = vmatprep.subr.bf16.mxu0 0
  %167 = vmatpush1.bf16.msra.mxu0 %v128
  %168 = vmatprep.subr.bf16.mxu0 0
  %169 = vmatpush1.bf16.msra.mxu0 %v129
  %170 = vmatprep.subr.bf16.mxu0 0
  %171 = vmatpush1.bf16.msra.mxu0 %v130
  %172 = vmatprep.subr.bf16.mxu0 0
  %173 = vmatpush1.bf16.msra.mxu0 %v131
  %174 = vmatprep.subr.bf16.mxu0 0
  %175 = vmatpush1.bf16.msra.mxu0 %v132
  %176 = vmatprep.subr.bf16.mxu0 0
  %177 = vmatpush1.bf16.msra.mxu0 %v133
  %178 = vmatprep.subr.bf16.mxu0 0
  %179 = vmatpush1.bf16.msra.mxu0 %v134
  %180 = vmatprep.subr.bf16.mxu0 0
  %181 = vmatpush1.bf16.msra.mxu0 %v135
  %182 = vmatprep.subr.bf16.mxu0 0
  %183 = vmatpush1.bf16.msra.mxu0 %v136
  %184 = vmatprep.subr.bf16.mxu0 0
  %185 = vmatpush1.bf16.msra.mxu0 %v137
  %186 = vmatprep.mubr.bf16.mxu0 %v55
  %187 = vmatmul.mubr.bf16.gmra.mrb[0].mxu0 %v54
  %v188 = vpop.f32.mrb[0].mxu0
  %v189 = vadd.f32 0.0, %v188
  %v190 = vpop.f32.mrb[0].mxu0
  %v191 = vpop.f32.mrb[0].mxu0
  %v192 = vpop.f32.mrb[0].mxu0
  %193 = vdwg.mxu0
  %v194 = vld [vmem:[%s2] sm:$0x1]
  %v195 = vld [vmem:[%s3] sm:$0x1]
  %vm196 = vcmask 261120
  %v197 = vsel %vm196, %v189, 0.0
  %v198 = vrot.slane %v197, 4
  %v199 = vadd.f32 %v197, %v198
  %v200 = vrot.slane %v199, 2
  %v201 = vadd.f32 %v199, %v200
  %v202 = vrot.slane %v201, 1
  %v203 = vadd.f32 %v201, %v202
  %v204 = vmul.f32 %v203, 0.125
  %v205 = vmul.f32 %v189, %v189
  %v206 = vsel %vm196, %v205, 0.0
  %v207 = vrot.slane %v206, 4
  %v208 = vadd.f32 %v206, %v207
  %v209 = vrot.slane %v208, 2
  %v210 = vadd.f32 %v208, %v209
  %v211 = vrot.slane %v210, 1
  %v212 = vadd.f32 %v210, %v211
  %v213 = vmul.f32 %v212, 0.125
  %v214 = vmul.f32 %v204, %v204
  %v215 = vsub.f32 %v213, %v214
  %v216 = vadd.f32 %v215, 1e-05
  %v217 = vrsqrt.pop %v216
  %v218 = vmul.f32 %v217, %v194
  %v219 = vsub.f32 %v189, %v204
  %v220 = vlaneseq
  %v221 = vshrl.u32 %v220, 7
  %v222 = vsub.s32 0, %v221
  %v223 = vrot.slane %v218, %v222
  %v224 = vmul.f32 %v219, %v223
  %v226 = vlaneseq
  %v227 = vshrl.u32 %v226, 7
  %v228 = vsub.s32 0, %v227
  %v229 = vrot.slane %v195, %v228
  %v231 = vadd.f32 %v224, %v229
  %vm232 = vcmp.gt.f32.partialorder %v231, 0.0
  %v233 = vmul.f32 %v231, 0.2
  %v234 = vsel %vm232, %v231, %v233
  %235 = vst.msk [vmem:[%s4] sm:$0xff] %vm196, %v234
  // Predicated region
  $region18: #{discriminator_forward.6} parent=0 // pred_check
    _
  $region19: #{discriminator_forward.6} parent=0 // pred_check_branch
    %237 = sbr.rel (0) target = $region21
  $region20: #{discriminator_forward.6} parent=0 // pred_region
    _
  $region21: #{discriminator_forward.6} parent=0 // pred_fallthru
    _
  // Predicated region
  $region22: #{discriminator_forward.6} parent=0 // pred_check
    _
  $region23: #{discriminator_forward.6} parent=0 // pred_check_branch
    %239 = sbr.rel (0) target = $region25
  $region24: #{discriminator_forward.6} parent=0 // pred_region
    _
  $region25: #{discriminator_forward.6} parent=0 // pred_fallthru
    _

// kernel: discriminator_forward.7
$region0: #{discriminator_forward.7}
  #allocation0 [shape = 'u32[]', space=smem, size = 0x4, offset = 0x4, fixed_abs, tag = 'smem constant byte address 0x4 - core index']
  #allocation1 [shape = 'u32[144,128]{1,0:T(1,128)}', space=vmem, size = 0x12000, scoped, tag = 'internal scratch']
  %s0 = inlined_call_operand.vmem [shape: bf16[1,512], index: 0, kind: input, shape index: {}]
  %s1 = inlined_call_operand.vmem [shape: bf16[512,2], index: 1, kind: input, shape index: {}]
  %s2 = inlined_call_operand.hbm [shape: f32[1,2], index: 2, kind: output, shape index: {}]
  %s3 = sld [smem:[#allocation0]]
  $region18: #{discriminator_forward.7} parent=0
    _
  %s5 = ssub.s32 1, %s3
  %s6 = scalar_select 0, %s5, %s3
  $region1: #{discriminator_forward.7} parent=0
    #allocation2 [shape = 'u8[512]{0}', space=vmem, size = 0x400, scoped, tag = 'output window, operand 0, single buffered']
    #allocation3 [shape = 's32[1]{0}', space=sflag, size = 0x4, scoped, tag = 'scoped memory for discriminator_forward.7']
    %7 = vsyncpa [#allocation3], 0
    // Predicated region
    $region2: #{discriminator_forward.7} parent=1 // pred_check
      _
    $region3: #{discriminator_forward.7} parent=1 // pred_check_branch
      %9 = sbr.rel (0) target = $region5
    $region4: #{discriminator_forward.7} parent=1 // pred_region
      _
    $region5: #{discriminator_forward.7} parent=1 // pred_fallthru
      _
    // Predicated region
    $region6: #{discriminator_forward.7} parent=1 // pred_check
      _
    $region7: #{discriminator_forward.7} parent=1 // pred_check_branch
      %11 = sbr.rel (0) target = $region9
    $region8: #{discriminator_forward.7} parent=1 // pred_region
      _
    $region9: #{discriminator_forward.7} parent=1 // pred_fallthru
      _
    %v13 = vld [vmem:[%s0] sm:$0xf]
    %v14 = vld [vmem:[%s1] sm:$0xf]
    %v15 = vld [vmem:[%s1 + $0x4] sm:$0xf]
    %v16 = vld [vmem:[%s1 + $0x8] sm:$0xf]
    %v17 = vld [vmem:[%s1 + $0xc] sm:$0xf]
    %v18 = vld [vmem:[%s1 + $0x10] sm:$0xf]
    %v19 = vld [vmem:[%s1 + $0x14] sm:$0xf]
    %v20 = vld [vmem:[%s1 + $0x18] sm:$0xf]
    %v21 = vld [vmem:[%s1 + $0x1c] sm:$0xf]
    %v22 = vld [vmem:[%s1 + $0x20] sm:$0xf]
    %v23 = vld [vmem:[%s1 + $0x24] sm:$0xf]
    %v24 = vld [vmem:[%s1 + $0x28] sm:$0xf]
    %v25 = vld [vmem:[%s1 + $0x2c] sm:$0xf]
    %v26 = vld [vmem:[%s1 + $0x30] sm:$0xf]
    %v27 = vld [vmem:[%s1 + $0x34] sm:$0xf]
    %v28 = vld [vmem:[%s1 + $0x38] sm:$0xf]
    %v29 = vld [vmem:[%s1 + $0x3c] sm:$0xf]
    %v30 = vld [vmem:[%s1 + $0x40] sm:$0xf]
    %v31 = vld [vmem:[%s1 + $0x44] sm:$0xf]
    %v32 = vld [vmem:[%s1 + $0x48] sm:$0xf]
    %v33 = vld [vmem:[%s1 + $0x4c] sm:$0xf]
    %v34 = vld [vmem:[%s1 + $0x50] sm:$0xf]
    %v35 = vld [vmem:[%s1 + $0x54] sm:$0xf]
    %v36 = vld [vmem:[%s1 + $0x58] sm:$0xf]
    %v37 = vld [vmem:[%s1 + $0x5c] sm:$0xf]
    %v38 = vld [vmem:[%s1 + $0x60] sm:$0xf]
    %v39 = vld [vmem:[%s1 + $0x64] sm:$0xf]
    %v40 = vld [vmem:[%s1 + $0x68] sm:$0xf]
    %v41 = vld [vmem:[%s1 + $0x6c] sm:$0xf]
    %v42 = vld [vmem:[%s1 + $0x70] sm:$0xf]
    %v43 = vld [vmem:[%s1 + $0x74] sm:$0xf]
    %v44 = vld [vmem:[%s1 + $0x78] sm:$0xf]
    %v45 = vld [vmem:[%s1 + $0x7c] sm:$0xf]
    %v46 = vld [vmem:[%s1 + $0x80] sm:$0xf]
    %v47 = vld [vmem:[%s1 + $0x84] sm:$0xf]
    %v48 = vld [vmem:[%s1 + $0x88] sm:$0xf]
    %v49 = vld [vmem:[%s1 + $0x8c] sm:$0xf]
    %v50 = vld [vmem:[%s1 + $0x90] sm:$0xf]
    %v51 = vld [vmem:[%s1 + $0x94] sm:$0xf]
    %v52 = vld [vmem:[%s1 + $0x98] sm:$0xf]
    %v53 = vld [vmem:[%s1 + $0x9c] sm:$0xf]
    %v54 = vld [vmem:[%s1 + $0xa0] sm:$0xf]
    %v55 = vld [vmem:[%s1 + $0xa4] sm:$0xf]
    %v56 = vld [vmem:[%s1 + $0xa8] sm:$0xf]
    %v57 = vld [vmem:[%s1 + $0xac] sm:$0xf]
    %v58 = vld [vmem:[%s1 + $0xb0] sm:$0xf]
    %v59 = vld [vmem:[%s1 + $0xb4] sm:$0xf]
    %v60 = vld [vmem:[%s1 + $0xb8] sm:$0xf]
    %v61 = vld [vmem:[%s1 + $0xbc] sm:$0xf]
    %v62 = vld [vmem:[%s1 + $0xc0] sm:$0xf]
    %v63 = vld [vmem:[%s1 + $0xc4] sm:$0xf]
    %v64 = vld [vmem:[%s1 + $0xc8] sm:$0xf]
    %v65 = vld [vmem:[%s1 + $0xcc] sm:$0xf]
    %v66 = vld [vmem:[%s1 + $0xd0] sm:$0xf]
    %v67 = vld [vmem:[%s1 + $0xd4] sm:$0xf]
    %v68 = vld [vmem:[%s1 + $0xd8] sm:$0xf]
    %v69 = vld [vmem:[%s1 + $0xdc] sm:$0xf]
    %v70 = vld [vmem:[%s1 + $0xe0] sm:$0xf]
    %v71 = vld [vmem:[%s1 + $0xe4] sm:$0xf]
    %v72 = vld [vmem:[%s1 + $0xe8] sm:$0xf]
    %v73 = vld [vmem:[%s1 + $0xec] sm:$0xf]
    %v74 = vld [vmem:[%s1 + $0xf0] sm:$0xf]
    %v75 = vld [vmem:[%s1 + $0xf4] sm:$0xf]
    %v76 = vld [vmem:[%s1 + $0xf8] sm:$0xf]
    %v77 = vld [vmem:[%s1 + $0xfc] sm:$0xf]
    %v80 = vunpack.c.l.s4 1966171168
    %v81 = vunpack.c.0.s8 %v80
    %v82 = vlaneseq
    %v83 = vshrl.u32 %v82, 7
    %v84 = vsub.s32 %v81, %v83
    %v85 = vrot.slane %v13, %v84
    %v86 = vcombine.high %v85, %v85
    %v88 = vunpack.c.l.s4 1966171168
    %v89 = vunpack.c.0.s8 %v88
    %v90 = vlaneseq
    %v91 = vshrl.u32 %v90, 7
    %v92 = vsub.s32 %v89, %v91
    %v93 = vrot.slane %v85, %v92
    %v95 = vunpack.c.l.s4 1966171168
    %v96 = vunpack.c.0.s8 %v95
    %v97 = vlaneseq
    %v98 = vshrl.u32 %v97, 7
    %v99 = vsub.s32 %v96, %v98
    %v100 = vrot.slane %v86, %v99
    %v101 = vcombine.high %v93, %v93
    %v102 = vcombine.high %v100, %v100
    %v171 = vunpack.c.l.b16 %v14
    %v172 = vunpack.c.l.b16 %v15
    %v173 = vunpack.c.l.b16 %v16
    %v174 = vunpack.c.l.b16 %v17
    %v175 = vunpack.c.l.b16 %v18
    %v176 = vunpack.c.l.b16 %v19
    %v177 = vunpack.c.l.b16 %v20
    %v178 = vunpack.c.l.b16 %v21
    %v179 = vunpack.c.l.b16 %v22
    %v180 = vunpack.c.l.b16 %v23
    %v181 = vunpack.c.l.b16 %v24
    %v182 = vunpack.c.l.b16 %v25
    %v183 = vunpack.c.l.b16 %v26
    %v184 = vunpack.c.l.b16 %v27
    %v185 = vunpack.c.l.b16 %v28
    %v186 = vunpack.c.l.b16 %v29
    %v187 = vunpack.c.l.b16 %v30
    %v188 = vunpack.c.l.b16 %v31
    %v189 = vunpack.c.l.b16 %v32
    %v190 = vunpack.c.l.b16 %v33
    %v191 = vunpack.c.l.b16 %v34
    %v192 = vunpack.c.l.b16 %v35
    %v193 = vunpack.c.l.b16 %v36
    %v194 = vunpack.c.l.b16 %v37
    %v195 = vunpack.c.l.b16 %v38
    %v196 = vunpack.c.l.b16 %v39
    %v197 = vunpack.c.l.b16 %v40
    %v198 = vunpack.c.l.b16 %v41
    %v199 = vunpack.c.l.b16 %v42
    %v200 = vunpack.c.l.b16 %v43
    %v201 = vunpack.c.l.b16 %v44
    %v202 = vunpack.c.l.b16 %v45
    %v203 = vunpack.c.l.b16 %v46
    %v204 = vunpack.c.l.b16 %v47
    %v205 = vunpack.c.l.b16 %v48
    %v206 = vunpack.c.l.b16 %v49
    %v207 = vunpack.c.l.b16 %v50
    %v208 = vunpack.c.l.b16 %v51
    %v209 = vunpack.c.l.b16 %v52
    %v210 = vunpack.c.l.b16 %v53
    %v211 = vunpack.c.l.b16 %v54
    %v212 = vunpack.c.l.b16 %v55
    %v213 = vunpack.c.l.b16 %v56
    %v214 = vunpack.c.l.b16 %v57
    %v215 = vunpack.c.l.b16 %v58
    %v216 = vunpack.c.l.b16 %v59
    %v217 = vunpack.c.l.b16 %v60
    %v218 = vunpack.c.l.b16 %v61
    %v219 = vunpack.c.l.b16 %v62
    %v220 = vunpack.c.l.b16 %v63
    %v221 = vunpack.c.l.b16 %v64
    %v222 = vunpack.c.l.b16 %v65
    %v223 = vunpack.c.l.b16 %v66
    %v224 = vunpack.c.l.b16 %v67
    %v225 = vunpack.c.l.b16 %v68
    %v226 = vunpack.c.l.b16 %v69
    %v227 = vunpack.c.l.b16 %v70
    %v228 = vunpack.c.l.b16 %v71
    %v229 = vunpack.c.l.b16 %v72
    %v230 = vunpack.c.l.b16 %v73
    %v231 = vunpack.c.l.b16 %v74
    %v232 = vunpack.c.l.b16 %v75
    %v233 = vunpack.c.l.b16 %v76
    %v234 = vunpack.c.l.b16 %v77
    %v235 = vpack.c.b16 %v172, %v171
    %v236 = vpack.c.b16 %v174, %v173
    %v237 = vpack.c.b16 %v176, %v175
    %v238 = vpack.c.b16 %v178, %v177
    %v239 = vpack.c.b16 %v180, %v179
    %v240 = vpack.c.b16 %v182, %v181
    %v241 = vpack.c.b16 %v184, %v183
    %v242 = vpack.c.b16 %v186, %v185
    %v243 = vpack.c.b16 %v188, %v187
    %v244 = vpack.c.b16 %v190, %v189
    %v245 = vpack.c.b16 %v192, %v191
    %v246 = vpack.c.b16 %v194, %v193
    %v247 = vpack.c.b16 %v196, %v195
    %v248 = vpack.c.b16 %v198, %v197
    %v249 = vpack.c.b16 %v200, %v199
    %v250 = vpack.c.b16 %v202, %v201
    %v251 = vpack.c.b16 %v204, %v203
    %v252 = vpack.c.b16 %v206, %v205
    %v253 = vpack.c.b16 %v208, %v207
    %v254 = vpack.c.b16 %v210, %v209
    %v255 = vpack.c.b16 %v212, %v211
    %v256 = vpack.c.b16 %v214, %v213
    %v257 = vpack.c.b16 %v216, %v215
    %v258 = vpack.c.b16 %v218, %v217
    %v259 = vpack.c.b16 %v220, %v219
    %v260 = vpack.c.b16 %v222, %v221
    %v261 = vpack.c.b16 %v224, %v223
    %v262 = vpack.c.b16 %v226, %v225
    %v263 = vpack.c.b16 %v228, %v227
    %v264 = vpack.c.b16 %v230, %v229
    %v265 = vpack.c.b16 %v232, %v231
    %v266 = vpack.c.b16 %v234, %v233
    %299 = vmatprep.subr.bf16.mxu0 0
    %300 = vmatpush1.bf16.msra.mxu0 %v235
    %301 = vmatprep.subr.bf16.mxu0 0
    %302 = vmatpush1.bf16.msra.mxu0 %v236
    %303 = vmatprep.subr.bf16.mxu0 0
    %304 = vmatpush1.bf16.msra.mxu0 %v237
    %305 = vmatprep.subr.bf16.mxu0 0
    %306 = vmatpush1.bf16.msra.mxu0 %v238
    %307 = vmatprep.subr.bf16.mxu0 0
    %308 = vmatpush1.bf16.msra.mxu0 %v239
    %309 = vmatprep.subr.bf16.mxu0 0
    %310 = vmatpush1.bf16.msra.mxu0 %v240
    %311 = vmatprep.subr.bf16.mxu0 0
    %312 = vmatpush1.bf16.msra.mxu0 %v241
    %313 = vmatprep.subr.bf16.mxu0 0
    %314 = vmatpush1.bf16.msra.mxu0 %v242
    %315 = vmatprep.subr.bf16.mxu0 0
    %316 = vmatpush1.bf16.msra.mxu0 %v243
    %317 = vmatprep.subr.bf16.mxu0 0
    %318 = vmatpush1.bf16.msra.mxu0 %v244
    %319 = vmatprep.subr.bf16.mxu0 0
    %320 = vmatpush1.bf16.msra.mxu0 %v245
    %321 = vmatprep.subr.bf16.mxu0 0
    %322 = vmatpush1.bf16.msra.mxu0 %v246
    %323 = vmatprep.subr.bf16.mxu0 0
    %324 = vmatpush1.bf16.msra.mxu0 %v247
    %325 = vmatprep.subr.bf16.mxu0 0
    %326 = vmatpush1.bf16.msra.mxu0 %v248
    %327 = vmatprep.subr.bf16.mxu0 0
    %328 = vmatpush1.bf16.msra.mxu0 %v249
    %329 = vmatprep.subr.bf16.mxu0 0
    %330 = vmatpush1.bf16.msra.mxu0 %v250
    %331 = vmatprep.mubr.bf16.mxu0 %v100
    %332 = vmatmul.mubr.bf16.gmra.mrb[0].mxu0 %v93
    %v333 = vpop.f32.mrb[0].mxu0
    %v334 = vadd.f32 0.0, %v333
    %v335 = vpop.f32.mrb[0].mxu0
    %v336 = vpop.f32.mrb[0].mxu0
    %v337 = vpop.f32.mrb[0].mxu0
    %338 = vdwg.mxu0
    %339 = vmatprep.subr.bf16.mxu0 0
    %340 = vmatpush1.bf16.msra.mxu0 %v251
    %341 = vmatprep.subr.bf16.mxu0 0
    %342 = vmatpush1.bf16.msra.mxu0 %v252
    %343 = vmatprep.subr.bf16.mxu0 0
    %344 = vmatpush1.bf16.msra.mxu0 %v253
    %345 = vmatprep.subr.bf16.mxu0 0
    %346 = vmatpush1.bf16.msra.mxu0 %v254
    %347 = vmatprep.subr.bf16.mxu0 0
    %348 = vmatpush1.bf16.msra.mxu0 %v255
    %349 = vmatprep.subr.bf16.mxu0 0
    %350 = vmatpush1.bf16.msra.mxu0 %v256
    %351 = vmatprep.subr.bf16.mxu0 0
    %352 = vmatpush1.bf16.msra.mxu0 %v257
    %353 = vmatprep.subr.bf16.mxu0 0
    %354 = vmatpush1.bf16.msra.mxu0 %v258
    %355 = vmatprep.subr.bf16.mxu0 0
    %356 = vmatpush1.bf16.msra.mxu0 %v259
    %357 = vmatprep.subr.bf16.mxu0 0
    %358 = vmatpush1.bf16.msra.mxu0 %v260
    %359 = vmatprep.subr.bf16.mxu0 0
    %360 = vmatpush1.bf16.msra.mxu0 %v261
    %361 = vmatprep.subr.bf16.mxu0 0
    %362 = vmatpush1.bf16.msra.mxu0 %v262
    %363 = vmatprep.subr.bf16.mxu0 0
    %364 = vmatpush1.bf16.msra.mxu0 %v263
    %365 = vmatprep.subr.bf16.mxu0 0
    %366 = vmatpush1.bf16.msra.mxu0 %v264
    %367 = vmatprep.subr.bf16.mxu0 0
    %368 = vmatpush1.bf16.msra.mxu0 %v265
    %369 = vmatprep.subr.bf16.mxu0 0
    %370 = vmatpush1.bf16.msra.mxu0 %v266
    %371 = vmatprep.mubr.bf16.mxu0 %v102
    %372 = vmatmul.mubr.bf16.gmra.mrb[0].mxu0 %v101
    %v373 = vpop.f32.mrb[0].mxu0
    %v374 = vadd.f32 %v334, %v373
    %v375 = vpop.f32.mrb[0].mxu0
    %v376 = vpop.f32.mrb[0].mxu0
    %v377 = vpop.f32.mrb[0].mxu0
    %378 = vdwg.mxu0
    %vm379 = vcmask 8192
    %380 = vst.msk [vmem:[#allocation2] sm:$0x1] %vm379, %v374
    // Predicated region
    $region10: #{discriminator_forward.7} parent=1 // pred_check
      _
    $region11: #{discriminator_forward.7} parent=1 // pred_check_branch
      %382 = sbr.rel (0) target = $region13
    $region12: #{discriminator_forward.7} parent=1 // pred_region
      %s384 = ssub.s32 16, 16
      %385 = vsyncadd [#allocation3], %s384
      %s387 = sshll.u32 [#allocation2], 4
      %s388 = int_to_ptr.vmem [resolvable:$true] %s387
      %390 = dma.vmem_to_hbm [thread:$0]  %s388, 16, %s2, [#allocation3]
    $region13: #{discriminator_forward.7} parent=1 // pred_fallthru
      _
    // Predicated region
    $region14: #{discriminator_forward.7} parent=1 // pred_check
      _
    $region15: #{discriminator_forward.7} parent=1 // pred_check_branch
      %392 = sbr.rel (0) target = $region17
    $region16: #{discriminator_forward.7} parent=1 // pred_region
      %393 = dma.done [#allocation3], 16
    $region17: #{discriminator_forward.7} parent=1 // pred_fallthru
      _
    %394 = vsyncpa [#allocation3], 1

</llo_original>
